<compile_context>
chip_gen: v7x
topology: tpu7x:2x2x1
jax: 0.10.0
libtpu: 0.0.40
codegen_flags: <defaults>
</compile_context>

<pallas_src>
import functools
import math

import jax
import jax.numpy as jnp
import numpy as np
from jax import lax
from jax.experimental import pallas as pl
from jax.experimental.pallas import tpu as pltpu


def create_dct(n, m):
    """Orthonormal DCT-II matrix, truncated to first m rows -> shape [m, n]."""
    k = np.arange(n, dtype=np.float64)[:, None]
    i = np.arange(n, dtype=np.float64)[None, :]
    d = np.sqrt(2.0 / n) * np.cos(np.pi * (2.0 * i + 1.0) * k / (2.0 * n))
    d[0, :] *= 1.0 / np.sqrt(2.0)
    return jnp.asarray(d[:m], dtype=jnp.float32)


def _dct_attention_kernel(qd_ref, qdt_ref, mask_ref, q_ref, kv_ref,
                          o_ref, *, heads_per_block, head_dim):
    # Scale folded into the energy tile: (1/sqrt(sqrt(d)))^2 = 1/sqrt(d).
    inv_scale = 1.0 / math.sqrt(head_dim)
    hd = heads_per_block * head_dim

    qd = qd_ref[...]                       # [M, N]   (grid-constant)
    qdt = qdt_ref[...]                     # [N, M]   (grid-constant)
    msk = mask_ref[0]                      # [1, N]   lane-dense mask row
    qd_m = qd * msk                        # mask folded into DCT rows (K/V path)

    q = q_ref[0, 0]                        # [N, Hb*D]
    kv = kv_ref[0, 0]                      # [N, 2*Hb*D]  (K || V, fused in wrapper)

    # DCT projection along the sequence axis (fused across heads, K/V fused).
    qs = jnp.dot(qd, q, preferred_element_type=jnp.float32)      # [M, Hb*D]
    kvs = jnp.dot(qd_m, kv, preferred_element_type=jnp.float32)  # [M, 2*Hb*D]
    ks = kvs[:, :hd]
    vs = kvs[:, hd:]

    # Per-head attention in DCT space (M x M energy tiles).
    outs = []
    for h in range(heads_per_block):
        lo = h * head_dim
        hi = lo + head_dim
        qh = qs[:, lo:hi]                  # [M, D]
        kh = ks[:, lo:hi]                  # [M, D]
        vh = vs[:, lo:hi]                  # [M, D]
        energy = lax.dot_general(
            qh, kh, (((1,), (1,)), ((), ())),
            preferred_element_type=jnp.float32) * inv_scale       # [M, M]
        e = energy - jnp.max(energy, axis=-1, keepdims=True)
        p = jnp.exp(e)
        # Exact normalization (approx reciprocal was the source of the
        # tolerance failure; these tiles are tiny so the divide is free).
        attn = p / jnp.sum(p, axis=-1, keepdims=True)
        outs.append(jnp.dot(attn, vh, preferred_element_type=jnp.float32))
    av = outs[0] if heads_per_block == 1 else jnp.concatenate(outs, axis=-1)

    # Back to sequence space: x = Q_dct^T @ (attn @ Vs), lane-dense store.
    x = jnp.dot(qdt, av, preferred_element_type=jnp.float32)      # [N, Hb*D]
    o_ref[0, 0] = x.astype(o_ref.dtype)


def dct_attention(Q, K, V, mask, q_dct, head_dim, *,
                  heads_per_block=None, compute_dtype=None):
    B, H, N, D = Q.shape
    M = q_dct.shape[0]
    if heads_per_block is None:
        heads_per_block = H
    assert H % heads_per_block == 0
    G = H // heads_per_block
    HD = heads_per_block * D
    out_dtype = Q.dtype
    cdt = compute_dtype if compute_dtype is not None else Q.dtype

    def to_slab(x):
        # [B, H, N, D] -> [B, G, N, Hb*D] : lane-dense head-fused layout.
        return (x.reshape(B, G, heads_per_block, N, D)
                 .transpose(0, 1, 3, 2, 4)
                 .reshape(B, G, N, HD)
                 .astype(cdt))

    Qs = to_slab(Q)
    # Fuse K and V into a single slab so their DCT projection is one wide MXU
    # call and no in-kernel concatenate is needed.
    KVs = jnp.concatenate([to_slab(K), to_slab(V)], axis=-1)      # [B,G,N,2*HD]
    mask2 = mask.astype(cdt).reshape(B, 1, N)          # lane-dense mask
    qd = q_dct.astype(cdt)
    qd_t = qd.T                                        # host/XLA-side transpose, once

    kernel = functools.partial(_dct_attention_kernel,
                               heads_per_block=heads_per_block,
                               head_dim=D)
    out = pl.pallas_call(
        kernel,
        out_shape=jax.ShapeDtypeStruct((B, G, N, HD), out_dtype),
        grid_spec=pltpu.PrefetchScalarGridSpec(
            num_scalar_prefetch=0,
            grid=(B, G),
            in_specs=[
                # Grid-constant DCT matrices (could be Buffered(1) on v7x when
                # VMEM-tight at production N/M).
                pl.BlockSpec((M, N), lambda b, g: (0, 0)),
                pl.BlockSpec((N, M), lambda b, g: (0, 0)),
                pl.BlockSpec((1, 1, N), lambda b, g: (b, 0, 0)),
                pl.BlockSpec((1, 1, N, HD), lambda b, g: (b, g, 0, 0)),
                pl.BlockSpec((1, 1, N, 2 * HD), lambda b, g: (b, g, 0, 0)),
            ],
            out_specs=pl.BlockSpec((1, 1, N, HD), lambda b, g: (b, g, 0, 0)),
        ),
        compiler_params=pltpu.CompilerParams(
            dimension_semantics=("parallel", "parallel")),
    )(qd, qd_t, mask2, Qs, KVs)

    # [B, G, N, Hb*D] -> [B, H, N, D]
    return (out.reshape(B, G, N, heads_per_block, D)
               .transpose(0, 1, 3, 2, 4)
               .reshape(B, H, N, D))


def ref_dct_attention(Q, K, V, mask, q_dct, head_dim):
    """Pure-JAX reference mirroring the PyTorch forward (max_n branch)."""
    s = 1.0 / math.sqrt(math.sqrt(head_dim))
    m = mask[:, None, :, None]
    Qs = jnp.matmul(q_dct, Q * s)
    Ks = jnp.matmul(q_dct, (K * s) * m)
    Vs = jnp.matmul(q_dct, V * m)
    energy = jnp.matmul(Qs, jnp.swapaxes(Ks, -2, -1))
    attn = jax.nn.softmax(energy, axis=-1)
    return jnp.matmul(jnp.matmul(q_dct.T, attn), Vs)


# TODO(synk): the `max_n is None` fallback branch (functional dct()/idct()
# along dim=-2 with ConstantPad1d) is not implemented; only the Q_dct-matrix
# path is.

if __name__ == "__main__":
    B, H, N, D = 2, 2, 16, 32     # head_dim = 32, maxN = 16 (seq), maxM = 8
    M = 8

    key = jax.random.PRNGKey(0)
    kq, kk, kv, km = jax.random.split(key, 4)
    Q = jax.random.normal(kq, (B, H, N, D), dtype=jnp.float32)
    K = jax.random.normal(kk, (B, H, N, D), dtype=jnp.float32)
    V = jax.random.normal(kv, (B, H, N, D), dtype=jnp.float32)
    mask = (jax.random.uniform(km, (B, N)) > 0.25).astype(jnp.float32)

    q_dct = create_dct(n=N, m=M)          # deterministic DCT "parameter"

    out = dct_attention(Q, K, V, mask, q_dct, head_dim=D)
    jax.block_until_ready(out)

    ref = ref_dct_attention(Q, K, V, mask, q_dct, head_dim=D)
    np.testing.assert_allclose(np.asarray(out), np.asarray(ref),
                               rtol=2e-3, atol=2e-3)
    print("KERNEL_OK")
</pallas_src>

<mosaic_0001>
module attributes {stable_mosaic.version = 11 : i64} {
  func.func @_dct_attention_kernel(%arg0: i32, %arg1: i32, %arg2: memref<8x16xf32, #tpu.memory_space<vmem>>, %arg3: memref<16x8xf32, #tpu.memory_space<vmem>>, %arg4: memref<1x1x16xf32, #tpu.memory_space<vmem>>, %arg5: memref<1x1x16x64xf32, #tpu.memory_space<vmem>>, %arg6: memref<1x1x16x128xf32, #tpu.memory_space<vmem>>, %arg7: memref<1x1x16x64xf32, #tpu.memory_space<vmem>>) attributes {dimension_semantics = [#tpu.dimension_semantics<parallel>, #tpu.dimension_semantics<parallel>], iteration_bounds = array<i64: 2, 1>, scalar_prefetch = 0 : i64, scratch_operands = 0 : i64, tpu.core_type = #tpu.core_type<tc>, window_params = [{pipeline_mode = #tpu.pipeline_mode<synchronous>, transform_indices = @transform_0, window_bounds = array<i64: 8, 16>}, {pipeline_mode = #tpu.pipeline_mode<synchronous>, transform_indices = @transform_1, window_bounds = array<i64: 16, 8>}, {transform_indices = @transform_2, window_bounds = array<i64: 1, 1, 16>}, {transform_indices = @transform_3, window_bounds = array<i64: 1, 1, 16, 64>}, {transform_indices = @transform_4, window_bounds = array<i64: 1, 1, 16, 128>}, {transform_indices = @transform_5, window_bounds = array<i64: 1, 1, 16, 64>}]} {
    %c0 = arith.constant 0 : index
    %c0_0 = arith.constant 0 : index
    %0 = vector.load %arg2[%c0, %c0_0] : memref<8x16xf32, #tpu.memory_space<vmem>>, vector<8x16xf32>
    %c0_1 = arith.constant 0 : index
    %c0_2 = arith.constant 0 : index
    %1 = vector.load %arg3[%c0_1, %c0_2] : memref<16x8xf32, #tpu.memory_space<vmem>>, vector<16x8xf32>
    %c0_3 = arith.constant 0 : index
    %c0_4 = arith.constant 0 : index
    %c0_5 = arith.constant 0 : index
    %2 = vector.load %arg4[%c0_3, %c0_4, %c0_5] : memref<1x1x16xf32, #tpu.memory_space<vmem>>, vector<1x1x16xf32>
    %3 = vector.shape_cast %2 : vector<1x1x16xf32> to vector<1x16xf32>
    %4 = vector.broadcast %3 : vector<1x16xf32> to vector<8x16xf32>
    %5 = arith.mulf %0, %4 : vector<8x16xf32>
    %c0_6 = arith.constant 0 : index
    %c0_7 = arith.constant 0 : index
    %c0_8 = arith.constant 0 : index
    %c0_9 = arith.constant 0 : index
    %6 = vector.load %arg5[%c0_6, %c0_7, %c0_8, %c0_9] : memref<1x1x16x64xf32, #tpu.memory_space<vmem>>, vector<1x1x16x64xf32>
    %7 = vector.shape_cast %6 : vector<1x1x16x64xf32> to vector<16x64xf32>
    %c0_10 = arith.constant 0 : index
    %c0_11 = arith.constant 0 : index
    %c0_12 = arith.constant 0 : index
    %c0_13 = arith.constant 0 : index
    %8 = vector.load %arg6[%c0_10, %c0_11, %c0_12, %c0_13] : memref<1x1x16x128xf32, #tpu.memory_space<vmem>>, vector<1x1x16x128xf32>
    %9 = vector.shape_cast %8 : vector<1x1x16x128xf32> to vector<16x128xf32>
    %cst = arith.constant dense<0.000000e+00> : vector<8x64xf32>
    %10 = tpu.matmul %0, %7, %cst {dimension_numbers = #tpu.dot_dimension_numbers<[1], [0], [0], [1], [0, 0, 1, 1], [], []>} : vector<8x16xf32>, vector<16x64xf32>, vector<8x64xf32> -> vector<8x64xf32>
    %cst_14 = arith.constant dense<0.000000e+00> : vector<8x128xf32>
    %11 = tpu.matmul %5, %9, %cst_14 {dimension_numbers = #tpu.dot_dimension_numbers<[1], [0], [0], [1], [0, 0, 1, 1], [], []>} : vector<8x16xf32>, vector<16x128xf32>, vector<8x128xf32> -> vector<8x128xf32>
    %12 = vector.extract_strided_slice %11 {offsets = [0, 0], sizes = [8, 64], strides = [1, 1]} : vector<8x128xf32> to vector<8x64xf32>
    %13 = vector.extract_strided_slice %11 {offsets = [0, 64], sizes = [8, 64], strides = [1, 1]} : vector<8x128xf32> to vector<8x64xf32>
    %14 = vector.extract_strided_slice %10 {offsets = [0, 0], sizes = [8, 32], strides = [1, 1]} : vector<8x64xf32> to vector<8x32xf32>
    %15 = vector.extract_strided_slice %12 {offsets = [0, 0], sizes = [8, 32], strides = [1, 1]} : vector<8x64xf32> to vector<8x32xf32>
    %16 = vector.extract_strided_slice %13 {offsets = [0, 0], sizes = [8, 32], strides = [1, 1]} : vector<8x64xf32> to vector<8x32xf32>
    %cst_15 = arith.constant dense<0.000000e+00> : vector<8x8xf32>
    %17 = tpu.matmul %14, %15, %cst_15 {dimension_numbers = #tpu.dot_dimension_numbers<[1], [1], [0], [0], [0, 0, 1, 0], [], []>} : vector<8x32xf32>, vector<8x32xf32>, vector<8x8xf32> -> vector<8x8xf32>
    %cst_16 = arith.constant 0.176776692 : f32
    %18 = vector.broadcast %cst_16 : f32 to vector<8x8xf32>
    %19 = arith.mulf %17, %18 : vector<8x8xf32>
    %cst_17 = arith.constant dense<0xFF800000> : vector<8xf32>
    %20 = vector.multi_reduction <maximumf>, %19, %cst_17 [1] : vector<8x8xf32> to vector<8xf32>
    %21 = vector.shape_cast %20 : vector<8xf32> to vector<8x1xf32>
    %22 = vector.broadcast %21 : vector<8x1xf32> to vector<8x8xf32>
    %23 = arith.subf %19, %22 : vector<8x8xf32>
    %24 = math.exp %23 : vector<8x8xf32>
    %cst_18 = arith.constant dense<0.000000e+00> : vector<8xf32>
    %25 = vector.multi_reduction <add>, %24, %cst_18 [1] : vector<8x8xf32> to vector<8xf32>
    %26 = vector.shape_cast %25 : vector<8xf32> to vector<8x1xf32>
    %27 = vector.broadcast %26 : vector<8x1xf32> to vector<8x8xf32>
    %28 = arith.divf %24, %27 : vector<8x8xf32>
    %cst_19 = arith.constant dense<0.000000e+00> : vector<8x32xf32>
    %29 = tpu.matmul %28, %16, %cst_19 {dimension_numbers = #tpu.dot_dimension_numbers<[1], [0], [0], [1], [0, 0, 1, 1], [], []>} : vector<8x8xf32>, vector<8x32xf32>, vector<8x32xf32> -> vector<8x32xf32>
    %30 = vector.extract_strided_slice %10 {offsets = [0, 32], sizes = [8, 32], strides = [1, 1]} : vector<8x64xf32> to vector<8x32xf32>
    %31 = vector.extract_strided_slice %12 {offsets = [0, 32], sizes = [8, 32], strides = [1, 1]} : vector<8x64xf32> to vector<8x32xf32>
    %32 = vector.extract_strided_slice %13 {offsets = [0, 32], sizes = [8, 32], strides = [1, 1]} : vector<8x64xf32> to vector<8x32xf32>
    %cst_20 = arith.constant dense<0.000000e+00> : vector<8x8xf32>
    %33 = tpu.matmul %30, %31, %cst_20 {dimension_numbers = #tpu.dot_dimension_numbers<[1], [1], [0], [0], [0, 0, 1, 0], [], []>} : vector<8x32xf32>, vector<8x32xf32>, vector<8x8xf32> -> vector<8x8xf32>
    %cst_21 = arith.constant 0.176776692 : f32
    %34 = vector.broadcast %cst_21 : f32 to vector<8x8xf32>
    %35 = arith.mulf %33, %34 : vector<8x8xf32>
    %cst_22 = arith.constant dense<0xFF800000> : vector<8xf32>
    %36 = vector.multi_reduction <maximumf>, %35, %cst_22 [1] : vector<8x8xf32> to vector<8xf32>
    %37 = vector.shape_cast %36 : vector<8xf32> to vector<8x1xf32>
    %38 = vector.broadcast %37 : vector<8x1xf32> to vector<8x8xf32>
    %39 = arith.subf %35, %38 : vector<8x8xf32>
    %40 = math.exp %39 : vector<8x8xf32>
    %cst_23 = arith.constant dense<0.000000e+00> : vector<8xf32>
    %41 = vector.multi_reduction <add>, %40, %cst_23 [1] : vector<8x8xf32> to vector<8xf32>
    %42 = vector.shape_cast %41 : vector<8xf32> to vector<8x1xf32>
    %43 = vector.broadcast %42 : vector<8x1xf32> to vector<8x8xf32>
    %44 = arith.divf %40, %43 : vector<8x8xf32>
    %cst_24 = arith.constant dense<0.000000e+00> : vector<8x32xf32>
    %45 = tpu.matmul %44, %32, %cst_24 {dimension_numbers = #tpu.dot_dimension_numbers<[1], [0], [0], [1], [0, 0, 1, 1], [], []>} : vector<8x8xf32>, vector<8x32xf32>, vector<8x32xf32> -> vector<8x32xf32>
    %46 = tpu.concatenate %29, %45 in 1 : vector<8x32xf32>, vector<8x32xf32> -> vector<8x64xf32>
    %cst_25 = arith.constant dense<0.000000e+00> : vector<16x64xf32>
    %47 = tpu.matmul %1, %46, %cst_25 {dimension_numbers = #tpu.dot_dimension_numbers<[1], [0], [0], [1], [0, 0, 1, 1], [], []>} : vector<16x8xf32>, vector<8x64xf32>, vector<16x64xf32> -> vector<16x64xf32>
    %c0_26 = arith.constant 0 : index
    %c0_27 = arith.constant 0 : index
    %c0_28 = arith.constant 0 : index
    %c0_29 = arith.constant 0 : index
    %48 = vector.load %arg7[%c0_26, %c0_27, %c0_28, %c0_29] : memref<1x1x16x64xf32, #tpu.memory_space<vmem>>, vector<1x1x16x64xf32>
    %49 = vector.shape_cast %48 : vector<1x1x16x64xf32> to vector<16x64xf32>
    %50 = vector.shape_cast %47 : vector<16x64xf32> to vector<1x1x16x64xf32>
    tpu.vector_store %arg7[%c0_26, %c0_27, %c0_28, %c0_29], %50 {strides = array<i32>} : memref<1x1x16x64xf32, #tpu.memory_space<vmem>>, vector<1x1x16x64xf32>,
    return
  }
  func.func @transform_0(%arg0: i32, %arg1: i32) -> (i32, i32) {
    %c0_i32 = arith.constant 0 : i32
    %c0_i32_0 = arith.constant 0 : i32
    %c0_i32_1 = arith.constant 0 : i32
    return %c0_i32, %c0_i32_0 : i32, i32
  }
  func.func @transform_1(%arg0: i32, %arg1: i32) -> (i32, i32) {
    %c0_i32 = arith.constant 0 : i32
    %c0_i32_0 = arith.constant 0 : i32
    %c0_i32_1 = arith.constant 0 : i32
    return %c0_i32, %c0_i32_0 : i32, i32
  }
  func.func @transform_2(%arg0: i32, %arg1: i32) -> (i32, i32, i32) {
    %c0_i32 = arith.constant 0 : i32
    %c0_i32_0 = arith.constant 0 : i32
    %c0_i32_1 = arith.constant 0 : i32
    return %arg0, %c0_i32, %c0_i32_0 : i32, i32, i32
  }
  func.func @transform_3(%arg0: i32, %arg1: i32) -> (i32, i32, i32, i32) {
    %c0_i32 = arith.constant 0 : i32
    %c0_i32_0 = arith.constant 0 : i32
    %c0_i32_1 = arith.constant 0 : i32
    return %arg0, %arg1, %c0_i32, %c0_i32_0 : i32, i32, i32, i32
  }
  func.func @transform_4(%arg0: i32, %arg1: i32) -> (i32, i32, i32, i32) {
    %c0_i32 = arith.constant 0 : i32
    %c0_i32_0 = arith.constant 0 : i32
    %c0_i32_1 = arith.constant 0 : i32
    return %arg0, %arg1, %c0_i32, %c0_i32_0 : i32, i32, i32, i32
  }
  func.func @transform_5(%arg0: i32, %arg1: i32) -> (i32, i32, i32, i32) {
    %c0_i32 = arith.constant 0 : i32
    %c0_i32_0 = arith.constant 0 : i32
    %c0_i32_1 = arith.constant 0 : i32
    return %arg0, %arg1, %c0_i32, %c0_i32_0 : i32, i32, i32, i32
  }
}

</mosaic_0001>

<llo_original>
// kernel: tpu_custom_call.1
$region0: #{tpu_custom_call.1}
  #allocation0 [shape = 'u32[]', space=smem, size = 0x4, offset = 0x4, fixed_abs, tag = 'smem constant byte address 0x4 - core index']
  #allocation1 [shape = 'u32[144,128]{1,0:T(1,128)}', space=vmem, size = 0x12000, scoped, tag = 'internal scratch']
  %s0 = inlined_call_operand.hbm [shape: f32[8,16], index: 0, kind: input, shape index: {}]
  %s1 = inlined_call_operand.vmem [shape: f32[16,8], index: 1, kind: input, shape index: {}]
  %s2 = inlined_call_operand.vmem [shape: f32[2,1,16], index: 2, kind: input, shape index: {}]
  %s3 = inlined_call_operand.vmem [shape: f32[2,1,16,64], index: 3, kind: input, shape index: {}]
  %s4 = inlined_call_operand.hbm [shape: f32[2,1,16,128], index: 4, kind: input, shape index: {}]
  %s5 = inlined_call_operand.hbm [shape: f32[2,1,16,64], index: 5, kind: output, shape index: {}]
  %s6 = sld [smem:[#allocation0]]
  $region61: #{tpu_custom_call.1} parent=0
    _
  %s8 = ssub.s32 1, %s6
  %s9 = scalar_select 0, %s8, %s6
  $region1: #{tpu_custom_call.1} parent=0
    #allocation2 [shape = 'u8[4096]{0}', space=vmem, size = 0x1000, scoped, tag = 'input window, operand 0, single buffered']
    #allocation3 [shape = 's32[2]{0}', space=sflag, size = 0x8, scoped, tag = 'scoped memory for tpu_custom_call.1']
    #allocation4 [shape = 's32[2]{0}', space=sflag, size = 0x8, scoped, tag = 'scoped memory for tpu_custom_call.1']
    #allocation5 [shape = 'u8[16384]{0}', space=vmem, size = 0x4000, scoped, tag = 'input window, operand 4']
    #allocation6 [shape = 's32[2]{0}', space=sflag, size = 0x8, scoped, tag = 'scoped memory for tpu_custom_call.1']
    #allocation7 [shape = 'u8[16384]{0}', space=vmem, size = 0x4000, scoped, tag = 'output window, operand 0']
    %10 = vsyncpa [#allocation3], 0
    %11 = vsyncpa [#allocation6], 0
    %s12 = scalar_lea.sflag [#allocation6], 1
    %13 = vsyncpa %s12, 0
    %14 = vsyncpa [#allocation4], 0
    %s15 = scalar_lea.sflag [#allocation4], 1
    %16 = vsyncpa %s15, 0
    loop: start=0, step=1, limit=4
    $region2: #{tpu_custom_call.1} parent=1 // loop_pre_header
      _
    $region3: #{tpu_custom_call.1} parent=1 // loop_header
      %s18 = sphi 0, %s22
      %p19 = scmp.ge.s32.totalorder %s18, 4
      %s25 = sphi 0, %s37
      %s26 = sphi 0, %s33
      %s27 = sphi 0, %s25
      %s28 = sphi 0, %s26
      %s29 = sphi 0, %s27
      %s30 = sphi 0, %s28
      %s38 = sphi 0, %s38
      %s40 = sphi 0, %s38
      %s41 = sphi 0, %s40
      %s55 = sphi 0, %s41
      %s59 = sphi 0, %s59
      %s61 = sphi 0, %s59
      %s62 = sphi 0, %s61
      %s76 = sphi 0, %s62
      %s82 = sphi 0, %s84
      %s85 = sphi 0, %s82
      %s86 = sphi 0, %s85
      %s102 = sphi 0, %s86
      %s110 = sphi 0, %s112
      %s113 = sphi 0, %s110
      %s114 = sphi 0, %s113
      %s130 = sphi 0, %s114
      %s138 = sphi 0, %s140
      %s141 = sphi 0, %s138
      %s142 = sphi 0, %s141
      %s158 = sphi 0, %s142
      %s166 = sphi 0, %s168
      %s169 = sphi 0, %s166
      %s170 = sphi 0, %s169
      %s186 = sphi 0, %s170
    $region4: #{tpu_custom_call.1} parent=1 // loop_header_branch
      %21 = sbr.rel (%p19) target = $region8
    $region5: #{tpu_custom_call.1} parent=1 // loop_body
      %s23 = ssub.s32 %s18, 1
      %s24 = ssub.s32 %s18, 2
      %s31 = sadd.s32 1, %s26
      %p32 = scmp.ge.s32.totalorder %s31, 1
      %s33 = scalar_select %p32, 0, %s31
      %s34 = sadd.s32 1, %s25
      %s35 = scalar_select %p32, %s34, %s25
      %p36 = scmp.ge.s32.totalorder %s35, 2
      %s37 = scalar_select %p36, 0, %s35
      %s39 = sadd.s32 %s38, 1
      %p42 = scmp.eq.s32.totalorder %s18, 1
      %p43 = scmp.ne.s32.totalorder %s38, %s40
      %p44 = scmp.eq.s32.totalorder %s18, 0
      %p45 = por %p43, %p44
      %p46 = scmp.ne.s32.totalorder %s38, %s40
      %p47 = scmp.eq.s32.totalorder %s23, 1
      %p48 = por %p46, %p47
      %p49 = scmp.ne.s32.totalorder %s40, %s41
      %p50 = scmp.eq.s32.totalorder %s23, 0
      %p51 = por %p49, %p50
      %p52 = scmp.ne.s32.totalorder %s40, %s41
      %p53 = scmp.eq.s32.totalorder %s24, 1
      %p54 = por %p52, %p53
      %p56 = scmp.ne.s32.totalorder %s41, %s55
      %p57 = scmp.eq.s32.totalorder %s24, 0
      %p58 = por %p56, %p57
      %s60 = sadd.s32 %s59, 1
      %p63 = scmp.eq.s32.totalorder %s18, 1
      %p64 = scmp.ne.s32.totalorder %s59, %s61
      %p65 = scmp.eq.s32.totalorder %s18, 0
      %p66 = por %p64, %p65
      %p67 = scmp.ne.s32.totalorder %s59, %s61
      %p68 = scmp.eq.s32.totalorder %s23, 1
      %p69 = por %p67, %p68
      %p70 = scmp.ne.s32.totalorder %s61, %s62
      %p71 = scmp.eq.s32.totalorder %s23, 0
      %p72 = por %p70, %p71
      %p73 = scmp.ne.s32.totalorder %s61, %s62
      %p74 = scmp.eq.s32.totalorder %s24, 1
      %p75 = por %p73, %p74
      %p77 = scmp.ne.s32.totalorder %s62, %s76
      %p78 = scmp.eq.s32.totalorder %s24, 0
      %p79 = por %p77, %p78
      %s80 = ssub.s32 %s25, %s37
      %p81 = scmp.eq.s32.totalorder %s80, 0
      %s83 = sadd.s32 %s82, 1
      %s84 = scalar_select %p81, %s82, %s83
      %p87 = pneg %p81
      %p88 = scmp.eq.s32.totalorder %s18, 1
      %p89 = por %p87, %p88
      %p90 = scmp.ne.s32.totalorder %s82, %s85
      %p91 = scmp.eq.s32.totalorder %s18, 0
      %p92 = por %p90, %p91
      %p93 = scmp.ne.s32.totalorder %s82, %s85
      %p94 = scmp.eq.s32.totalorder %s23, 1
      %p95 = por %p93, %p94
      %p96 = scmp.ne.s32.totalorder %s85, %s86
      %p97 = scmp.eq.s32.totalorder %s23, 0
      %p98 = por %p96, %p97
      %p99 = scmp.ne.s32.totalorder %s85, %s86
      %p100 = scmp.eq.s32.totalorder %s24, 1
      %p101 = por %p99, %p100
      %p103 = scmp.ne.s32.totalorder %s86, %s102
      %p104 = scmp.eq.s32.totalorder %s24, 0
      %p105 = por %p103, %p104
      %s106 = ssub.s32 %s25, %s37
      %s107 = ssub.s32 %s26, %s33
      %s108 = sor.u32 %s106, %s107
      %p109 = scmp.eq.s32.totalorder %s108, 0
      %s111 = sadd.s32 %s110, 1
      %s112 = scalar_select %p109, %s110, %s111
      %p115 = pneg %p109
      %p116 = scmp.eq.s32.totalorder %s18, 1
      %p117 = por %p115, %p116
      %p118 = scmp.ne.s32.totalorder %s110, %s113
      %p119 = scmp.eq.s32.totalorder %s18, 0
      %p120 = por %p118, %p119
      %p121 = scmp.ne.s32.totalorder %s110, %s113
      %p122 = scmp.eq.s32.totalorder %s23, 1
      %p123 = por %p121, %p122
      %p124 = scmp.ne.s32.totalorder %s113, %s114
      %p125 = scmp.eq.s32.totalorder %s23, 0
      %p126 = por %p124, %p125
      %p127 = scmp.ne.s32.totalorder %s113, %s114
      %p128 = scmp.eq.s32.totalorder %s24, 1
      %p129 = por %p127, %p128
      %p131 = scmp.ne.s32.totalorder %s114, %s130
      %p132 = scmp.eq.s32.totalorder %s24, 0
      %p133 = por %p131, %p132
      %s134 = ssub.s32 %s25, %s37
      %s135 = ssub.s32 %s26, %s33
      %s136 = sor.u32 %s134, %s135
      %p137 = scmp.eq.s32.totalorder %s136, 0
      %s139 = sadd.s32 %s138, 1
      %s140 = scalar_select %p137, %s138, %s139
      %p143 = pneg %p137
      %p144 = scmp.eq.s32.totalorder %s18, 1
      %p145 = por %p143, %p144
      %p146 = scmp.ne.s32.totalorder %s138, %s141
      %p147 = scmp.eq.s32.totalorder %s18, 0
      %p148 = por %p146, %p147
      %p149 = scmp.ne.s32.totalorder %s138, %s141
      %p150 = scmp.eq.s32.totalorder %s23, 1
      %p151 = por %p149, %p150
      %p152 = scmp.ne.s32.totalorder %s141, %s142
      %p153 = scmp.eq.s32.totalorder %s23, 0
      %p154 = por %p152, %p153
      %p155 = scmp.ne.s32.totalorder %s141, %s142
      %p156 = scmp.eq.s32.totalorder %s24, 1
      %p157 = por %p155, %p156
      %p159 = scmp.ne.s32.totalorder %s142, %s158
      %p160 = scmp.eq.s32.totalorder %s24, 0
      %p161 = por %p159, %p160
      %s162 = ssub.s32 %s25, %s37
      %s163 = ssub.s32 %s26, %s33
      %s164 = sor.u32 %s162, %s163
      %p165 = scmp.eq.s32.totalorder %s164, 0
      %s167 = sadd.s32 %s166, 1
      %s168 = scalar_select %p165, %s166, %s167
      %p171 = pneg %p165
      %p172 = scmp.eq.s32.totalorder %s18, 1
      %p173 = por %p171, %p172
      %p174 = scmp.ne.s32.totalorder %s166, %s169
      %p175 = scmp.eq.s32.totalorder %s18, 0
      %p176 = por %p174, %p175
      %p177 = scmp.ne.s32.totalorder %s166, %s169
      %p178 = scmp.eq.s32.totalorder %s23, 1
      %p179 = por %p177, %p178
      %p180 = scmp.ne.s32.totalorder %s169, %s170
      %p181 = scmp.eq.s32.totalorder %s23, 0
      %p182 = por %p180, %p181
      %p183 = scmp.ne.s32.totalorder %s169, %s170
      %p184 = scmp.eq.s32.totalorder %s24, 1
      %p185 = por %p183, %p184
      %p187 = scmp.ne.s32.totalorder %s170, %s186
      %p188 = scmp.eq.s32.totalorder %s24, 0
      %p189 = por %p187, %p188
      %p190 = scmp.le.s32.totalorder 1, %s18
      %p191 = scmp.lt.s32.totalorder %s18, 3
      %p192 = pnand %p190, %p191
      %p193 = pneg %p192
      // Predicated region
      $region9: #{tpu_custom_call.1} parent=5 // pred_check
        _
      $region10: #{tpu_custom_call.1} parent=5 // pred_check_branch
        %195 = sbr.rel (%p192) target = $region12
      $region11: #{tpu_custom_call.1} parent=5 // pred_region
        %s196 = ssub.s32 %s18, 1
        // Predicated region
        $region13: #{tpu_custom_call.1} parent=11 // pred_check
          %p197 = pneg %p51
        $region14: #{tpu_custom_call.1} parent=11 // pred_check_branch
          %199 = sbr.rel (%p197) target = $region16
        $region15: #{tpu_custom_call.1} parent=11 // pred_region
          %s201 = ssub.s32 128, 128
          %202 = vsyncadd [#allocation3], %s201
          %s204 = sshll.u32 [#allocation2], 4
          %s205 = int_to_ptr.vmem [resolvable:$true] %s204
          %207 = dma.hbm_to_vmem [thread:$0]  %s0, 128, %s205, [#allocation3]
        $region16: #{tpu_custom_call.1} parent=11 // pred_fallthru
          _
        // Predicated region
        $region17: #{tpu_custom_call.1} parent=11 // pred_check
          %p208 = pneg %p72
        $region18: #{tpu_custom_call.1} parent=11 // pred_check_branch
          %210 = sbr.rel (%p208) target = $region20
        $region19: #{tpu_custom_call.1} parent=11 // pred_region
          _
        $region20: #{tpu_custom_call.1} parent=11 // pred_fallthru
          _
      $region12: #{tpu_custom_call.1} parent=5 // pred_fallthru
        _
      %p211 = scmp.lt.s32.totalorder %s18, 2
      // Predicated region
      $region21: #{tpu_custom_call.1} parent=5 // pred_check
        %p212 = pneg %p211
      $region22: #{tpu_custom_call.1} parent=5 // pred_check_branch
        %214 = sbr.rel (%p212) target = $region24
      $region23: #{tpu_custom_call.1} parent=5 // pred_region
        // Predicated region
        $region25: #{tpu_custom_call.1} parent=23 // pred_check
          %p215 = pneg %p92
        $region26: #{tpu_custom_call.1} parent=23 // pred_check_branch
          %217 = sbr.rel (%p215) target = $region28
        $region27: #{tpu_custom_call.1} parent=23 // pred_region
          %p218 = scmp.lt.s32.totalorder %s25, 1
          %s219 = scalar_select %p218, %s25, 1
          %s220 = scalar_lea.vmem %s2, %s219
        $region28: #{tpu_custom_call.1} parent=23 // pred_fallthru
          _
        // Predicated region
        $region29: #{tpu_custom_call.1} parent=23 // pred_check
          %p221 = pneg %p120
        $region30: #{tpu_custom_call.1} parent=23 // pred_check_branch
          %223 = sbr.rel (%p221) target = $region32
        $region31: #{tpu_custom_call.1} parent=23 // pred_region
          %p224 = scmp.lt.s32.totalorder %s25, 1
          %s225 = scalar_select %p224, %s25, 1
          %p226 = scmp.lt.s32.totalorder %s26, 0
          %s227 = scalar_select %p226, %s26, 0
          %s228 = smul.addr %s227, 2
          %s229 = smul.addr %s225, 2
          %s230 = sadd.s32 %s228, %s229
          %s231 = smul.addr %s230, 8
          %s232 = scalar_lea.vmem %s3, %s231
        $region32: #{tpu_custom_call.1} parent=23 // pred_fallthru
          _
        // Predicated region
        $region33: #{tpu_custom_call.1} parent=23 // pred_check
          %p233 = pneg %p148
        $region34: #{tpu_custom_call.1} parent=23 // pred_check_branch
          %235 = sbr.rel (%p233) target = $region36
        $region35: #{tpu_custom_call.1} parent=23 // pred_region
          %s236 = sand.u32 %s138, 1
          %s237 = scalar_lea.sflag [#allocation6], %s236
          %s238 = sand.u32 %s138, 1
          %s239 = smul.addr %s238, 16
          %s240 = scalar_lea.vmem [#allocation5], %s239
          %s242 = ssub.s32 256, 256
          %243 = vsyncadd %s237, %s242
          %s244 = smul.addr %s26, 2
          %s245 = smul.addr %s25, 2
          %s246 = sadd.s32 %s244, %s245
          %s247 = smul.addr %s246, 128
          %s248 = scalar_lea.hbm %s4, %s247
          %s249 = sshll.u32 %s240, 4
          %s250 = int_to_ptr.vmem [resolvable:$true] %s249
          %255 = dma.hbm_to_vmem [thread:$0]  %s248, 256, %s250, %s237, 128, 128, 8
        $region36: #{tpu_custom_call.1} parent=23 // pred_fallthru
          _
      $region24: #{tpu_custom_call.1} parent=5 // pred_fallthru
        _
      %p256 = scmp.le.s32.totalorder 1, %s18
      %p257 = scmp.lt.s32.totalorder %s18, 3
      %p258 = pnand %p256, %p257
      %p259 = pneg %p258
      // Predicated region
      $region37: #{tpu_custom_call.1} parent=5 // pred_check
        _
      $region38: #{tpu_custom_call.1} parent=5 // pred_check_branch
        %261 = sbr.rel (%p258) target = $region40
      $region39: #{tpu_custom_call.1} parent=5 // pred_region
        %s262 = ssub.s32 %s18, 1
        // Predicated region
        $region41: #{tpu_custom_call.1} parent=39 // pred_check
          %p263 = pneg %p51
        $region42: #{tpu_custom_call.1} parent=39 // pred_check_branch
          %265 = sbr.rel (%p263) target = $region44
        $region43: #{tpu_custom_call.1} parent=39 // pred_region
          %266 = dma.done [#allocation3], 128
        $region44: #{tpu_custom_call.1} parent=39 // pred_fallthru
          _
        %s267 = sand.u32 %s141, 1
        %s268 = scalar_lea.sflag [#allocation6], %s267
        %s269 = sand.u32 %s141, 1
        %s270 = smul.addr %s269, 16
        %s271 = scalar_lea.vmem [#allocation5], %s270
        // Predicated region
        $region45: #{tpu_custom_call.1} parent=39 // pred_check
          %p272 = pneg %p154
        $region46: #{tpu_custom_call.1} parent=39 // pred_check_branch
          %274 = sbr.rel (%p272) target = $region48
        $region47: #{tpu_custom_call.1} parent=39 // pred_region
          %275 = dma.done %s268, 256
        $region48: #{tpu_custom_call.1} parent=39 // pred_fallthru
          _
        %p276 = pneg %p51
        %p277 = pneg %p48
        %p278 = pneg %p72
        %p279 = pneg %p69
        %p280 = scmp.lt.s32.totalorder %s27, 1
        %s281 = scalar_select %p280, %s27, 1
        %s282 = scalar_lea.vmem %s2, %s281
        %p283 = pneg %p98
        %p284 = pneg %p95
        %p285 = scmp.lt.s32.totalorder %s27, 1
        %s286 = scalar_select %p285, %s27, 1
        %p287 = scmp.lt.s32.totalorder %s28, 0
        %s288 = scalar_select %p287, %s28, 0
        %s289 = smul.addr %s288, 2
        %s290 = smul.addr %s286, 2
        %s291 = sadd.s32 %s289, %s290
        %s292 = smul.addr %s291, 8
        %s293 = scalar_lea.vmem %s3, %s292
        %p294 = pneg %p126
        %p295 = pneg %p123
        %s296 = sand.u32 %s141, 1
        %s297 = scalar_lea.sflag [#allocation6], %s296
        %s298 = sand.u32 %s141, 1
        %s299 = smul.addr %s298, 16
        %s300 = scalar_lea.vmem [#allocation5], %s299
        %p301 = pneg %p154
        %p302 = pneg %p151
        %p303 = pneg %p182
        %p304 = pneg %p179
        %s305 = sand.u32 %s169, 1
        %s306 = scalar_lea.sflag [#allocation4], %s305
        %s307 = sand.u32 %s169, 1
        %s308 = smul.addr %s307, 16
        %s309 = scalar_lea.vmem [#allocation7], %s308
        %p310 = scmp.lt.s32.totalorder %s27, 1
        %s311 = scalar_select %p310, %s27, 1
        %s312 = scalar_lea.vmem %s2, %s311
        %p313 = scmp.lt.s32.totalorder %s27, 1
        %s314 = scalar_select %p313, %s27, 1
        %p315 = scmp.lt.s32.totalorder %s28, 0
        %s316 = scalar_select %p315, %s28, 0
        %s317 = smul.addr %s316, 2
        %s318 = smul.addr %s314, 2
        %s319 = sadd.s32 %s317, %s318
        %s320 = smul.addr %s319, 8
        %s321 = scalar_lea.vmem %s3, %s320
        %v322 = vld [vmem:[#allocation2] sm:$0xff]
        %v323 = vld [vmem:[%s1] sm:$0xff]
        %v324 = vld [vmem:[%s1 + $0x8] sm:$0xff]
        %v325 = vld [vmem:[%s312] sm:$0x1]
        %v327 = vlaneseq
        %v328 = vshrl.u32 %v327, 7
        %v329 = vsub.s32 0, %v328
        %v330 = vrot.slane %v325, %v329
        %v332 = vmul.f32 %v322, %v330
        %v333 = vld [vmem:[%s321] sm:$0xff]
        %v334 = vld [vmem:[%s321 + $0x8] sm:$0xff]
        %v335 = vld [vmem:[%s271] sm:$0xff]
        %v336 = vld [vmem:[%s271 + $0x8] sm:$0xff]
        %vm337 = vcmask 130048
        %v339 = vsel %vm337, %v322, 0
        %341 = vmatprep.subr.mxu0 0.0
        %342 = vmatpush1.msra.mxu0 %v333
        %343 = vmatprep.subr.mxu0 0.0
        %344 = vmatpush1.msra.mxu0 %v334
        %345 = vmatprep.subr.mxu0 0.0
        %346 = vmatpush1.msra.mxu0 0.0
        %347 = vmatprep.subr.mxu0 0.0
        %348 = vmatpush1.msra.mxu0 0.0
        %349 = vmatprep.subr.mxu0 0.0
        %350 = vmatpush1.msra.mxu0 0.0
        %351 = vmatprep.subr.mxu0 0.0
        %352 = vmatpush1.msra.mxu0 0.0
        %353 = vmatprep.subr.mxu0 0.0
        %354 = vmatpush1.msra.mxu0 0.0
        %355 = vmatprep.subr.mxu0 0.0
        %356 = vmatpush1.msra.mxu0 0.0
        %357 = vmatprep.subr.mxu0 0.0
        %358 = vmatpush1.msra.mxu0 0.0
        %359 = vmatprep.subr.mxu0 0.0
        %360 = vmatpush1.msra.mxu0 0.0
        %361 = vmatprep.subr.mxu0 0.0
        %362 = vmatpush1.msra.mxu0 0.0
        %363 = vmatprep.subr.mxu0 0.0
        %364 = vmatpush1.msra.mxu0 0.0
        %365 = vmatprep.subr.mxu0 0.0
        %366 = vmatpush1.msra.mxu0 0.0
        %367 = vmatprep.subr.mxu0 0.0
        %368 = vmatpush1.msra.mxu0 0.0
        %369 = vmatprep.subr.mxu0 0.0
        %370 = vmatpush1.msra.mxu0 0.0
        %371 = vmatprep.subr.mxu0 0.0
        %372 = vmatpush1.msra.mxu0 0.0
        %373 = vmatprep.subr.mxu0 0.0
        %374 = vmatpush1.msra.mxu0 0.0
        %375 = vmatprep.subr.mxu0 0.0
        %376 = vmatpush1.msra.mxu0 0.0
        %377 = vmatprep.subr.mxu0 0.0
        %378 = vmatpush1.msra.mxu0 0.0
        %379 = vmatprep.subr.mxu0 0.0
        %380 = vmatpush1.msra.mxu0 0.0
        %381 = vmatprep.subr.mxu0 0.0
        %382 = vmatpush1.msra.mxu0 0.0
        %383 = vmatprep.subr.mxu0 0.0
        %384 = vmatpush1.msra.mxu0 0.0
        %385 = vmatprep.subr.mxu0 0.0
        %386 = vmatpush1.msra.mxu0 0.0
        %387 = vmatprep.subr.mxu0 0.0
        %388 = vmatpush1.msra.mxu0 0.0
        %389 = vmatprep.subr.mxu0 0.0
        %390 = vmatpush1.msra.mxu0 0.0
        %391 = vmatprep.subr.mxu0 0.0
        %392 = vmatpush1.msra.mxu0 0.0
        %393 = vmatprep.subr.mxu0 0.0
        %394 = vmatpush1.msra.mxu0 0.0
        %395 = vmatprep.subr.mxu0 0.0
        %396 = vmatpush1.msra.mxu0 0.0
        %397 = vmatprep.subr.mxu0 0.0
        %398 = vmatpush1.msra.mxu0 0.0
        %399 = vmatprep.subr.mxu0 0.0
        %400 = vmatpush1.msra.mxu0 0.0
        %401 = vmatprep.subr.mxu0 0.0
        %402 = vmatpush1.msra.mxu0 0.0
        %403 = vmatprep.subr.mxu0 0.0
        %404 = vmatpush1.msra.mxu0 0.0
        %405 = vmatprep.mubr.f32.mxu0 0.0
        %406 = vmatmul.mubr.f32.gmra.mrb[0].mxu0 %v339
        %v407 = vpop.f32.mrb[0].mxu0
        %v408 = vadd.f32 0.0, %v407
        %v409 = vpop.f32.mrb[0].mxu0
        %410 = vdwg.mxu0
        %v412 = vsel %vm337, %v332, 0
        %414 = vmatprep.subr.mxu0 0.0
        %415 = vmatpush1.msra.mxu0 %v335
        %416 = vmatprep.subr.mxu0 0.0
        %417 = vmatpush1.msra.mxu0 %v336
        %418 = vmatprep.subr.mxu0 0.0
        %419 = vmatpush1.msra.mxu0 0.0
        %420 = vmatprep.subr.mxu0 0.0
        %421 = vmatpush1.msra.mxu0 0.0
        %422 = vmatprep.subr.mxu0 0.0
        %423 = vmatpush1.msra.mxu0 0.0
        %424 = vmatprep.subr.mxu0 0.0
        %425 = vmatpush1.msra.mxu0 0.0
        %426 = vmatprep.subr.mxu0 0.0
        %427 = vmatpush1.msra.mxu0 0.0
        %428 = vmatprep.subr.mxu0 0.0
        %429 = vmatpush1.msra.mxu0 0.0
        %430 = vmatprep.subr.mxu0 0.0
        %431 = vmatpush1.msra.mxu0 0.0
        %432 = vmatprep.subr.mxu0 0.0
        %433 = vmatpush1.msra.mxu0 0.0
        %434 = vmatprep.subr.mxu0 0.0
        %435 = vmatpush1.msra.mxu0 0.0
        %436 = vmatprep.subr.mxu0 0.0
        %437 = vmatpush1.msra.mxu0 0.0
        %438 = vmatprep.subr.mxu0 0.0
        %439 = vmatpush1.msra.mxu0 0.0
        %440 = vmatprep.subr.mxu0 0.0
        %441 = vmatpush1.msra.mxu0 0.0
        %442 = vmatprep.subr.mxu0 0.0
        %443 = vmatpush1.msra.mxu0 0.0
        %444 = vmatprep.subr.mxu0 0.0
        %445 = vmatpush1.msra.mxu0 0.0
        %446 = vmatprep.subr.mxu0 0.0
        %447 = vmatpush1.msra.mxu0 0.0
        %448 = vmatprep.subr.mxu0 0.0
        %449 = vmatpush1.msra.mxu0 0.0
        %450 = vmatprep.subr.mxu0 0.0
        %451 = vmatpush1.msra.mxu0 0.0
        %452 = vmatprep.subr.mxu0 0.0
        %453 = vmatpush1.msra.mxu0 0.0
        %454 = vmatprep.subr.mxu0 0.0
        %455 = vmatpush1.msra.mxu0 0.0
        %456 = vmatprep.subr.mxu0 0.0
        %457 = vmatpush1.msra.mxu0 0.0
        %458 = vmatprep.subr.mxu0 0.0
        %459 = vmatpush1.msra.mxu0 0.0
        %460 = vmatprep.subr.mxu0 0.0
        %461 = vmatpush1.msra.mxu0 0.0
        %462 = vmatprep.subr.mxu0 0.0
        %463 = vmatpush1.msra.mxu0 0.0
        %464 = vmatprep.subr.mxu0 0.0
        %465 = vmatpush1.msra.mxu0 0.0
        %466 = vmatprep.subr.mxu0 0.0
        %467 = vmatpush1.msra.mxu0 0.0
        %468 = vmatprep.subr.mxu0 0.0
        %469 = vmatpush1.msra.mxu0 0.0
        %470 = vmatprep.subr.mxu0 0.0
        %471 = vmatpush1.msra.mxu0 0.0
        %472 = vmatprep.subr.mxu0 0.0
        %473 = vmatpush1.msra.mxu0 0.0
        %474 = vmatprep.subr.mxu0 0.0
        %475 = vmatpush1.msra.mxu0 0.0
        %476 = vmatprep.subr.mxu0 0.0
        %477 = vmatpush1.msra.mxu0 0.0
        %478 = vmatprep.mubr.f32.mxu0 0.0
        %479 = vmatmul.mubr.f32.gmra.mrb[0].mxu0 %v412
        %v480 = vpop.f32.mrb[0].mxu0
        %v481 = vadd.f32 0.0, %v480
        %v482 = vpop.f32.mrb[0].mxu0
        %483 = vdwg.mxu0
        %vm484 = vcmask 261120
        %v486 = vsel %vm484, %v408, 0
        %v489 = vsel %vm484, %v481, 0
        %491 = vmatprep.subr.mxu0 0.0
        %492 = vmatpush1.xpose.msra.mxu0 %v489
        %493 = vmatprep.subr.mxu0 0.0
        %494 = vmatpush1.xpose.msra.mxu0 0.0
        %495 = vmatprep.subr.mxu0 0.0
        %496 = vmatpush1.xpose.msra.mxu0 0.0
        %497 = vmatprep.subr.mxu0 0.0
        %498 = vmatpush1.xpose.msra.mxu0 0.0
        %499 = vmatprep.subr.mxu0 0.0
        %500 = vmatpush1.xpose.msra.mxu0 0.0
        %501 = vmatprep.subr.mxu0 0.0
        %502 = vmatpush1.xpose.msra.mxu0 0.0
        %503 = vmatprep.subr.mxu0 0.0
        %504 = vmatpush1.xpose.msra.mxu0 0.0
        %505 = vmatprep.subr.mxu0 0.0
        %506 = vmatpush1.xpose.msra.mxu0 0.0
        %507 = vmatprep.subr.mxu0 0.0
        %508 = vmatpush1.xpose.msra.mxu0 0.0
        %509 = vmatprep.subr.mxu0 0.0
        %510 = vmatpush1.xpose.msra.mxu0 0.0
        %511 = vmatprep.subr.mxu0 0.0
        %512 = vmatpush1.xpose.msra.mxu0 0.0
        %513 = vmatprep.subr.mxu0 0.0
        %514 = vmatpush1.xpose.msra.mxu0 0.0
        %515 = vmatprep.subr.mxu0 0.0
        %516 = vmatpush1.xpose.msra.mxu0 0.0
        %517 = vmatprep.subr.mxu0 0.0
        %518 = vmatpush1.xpose.msra.mxu0 0.0
        %519 = vmatprep.subr.mxu0 0.0
        %520 = vmatpush1.xpose.msra.mxu0 0.0
        %521 = vmatprep.subr.mxu0 0.0
        %522 = vmatpush1.xpose.msra.mxu0 0.0
        %523 = vmatprep.subr.mxu0 0.0
        %524 = vmatpush1.xpose.msra.mxu0 0.0
        %525 = vmatprep.subr.mxu0 0.0
        %526 = vmatpush1.xpose.msra.mxu0 0.0
        %527 = vmatprep.subr.mxu0 0.0
        %528 = vmatpush1.xpose.msra.mxu0 0.0
        %529 = vmatprep.subr.mxu0 0.0
        %530 = vmatpush1.xpose.msra.mxu0 0.0
        %531 = vmatprep.subr.mxu0 0.0
        %532 = vmatpush1.xpose.msra.mxu0 0.0
        %533 = vmatprep.subr.mxu0 0.0
        %534 = vmatpush1.xpose.msra.mxu0 0.0
        %535 = vmatprep.subr.mxu0 0.0
        %536 = vmatpush1.xpose.msra.mxu0 0.0
        %537 = vmatprep.subr.mxu0 0.0
        %538 = vmatpush1.xpose.msra.mxu0 0.0
        %539 = vmatprep.subr.mxu0 0.0
        %540 = vmatpush1.xpose.msra.mxu0 0.0
        %541 = vmatprep.subr.mxu0 0.0
        %542 = vmatpush1.xpose.msra.mxu0 0.0
        %543 = vmatprep.subr.mxu0 0.0
        %544 = vmatpush1.xpose.msra.mxu0 0.0
        %545 = vmatprep.subr.mxu0 0.0
        %546 = vmatpush1.xpose.msra.mxu0 0.0
        %547 = vmatprep.subr.mxu0 0.0
        %548 = vmatpush1.xpose.msra.mxu0 0.0
        %549 = vmatprep.subr.mxu0 0.0
        %550 = vmatpush1.xpose.msra.mxu0 0.0
        %551 = vmatprep.subr.mxu0 0.0
        %552 = vmatpush1.xpose.msra.mxu0 0.0
        %553 = vmatprep.subr.mxu0 0.0
        %554 = vmatpush1.xpose.msra.mxu0 0.0
        %555 = vmatprep.mubr.f32.mxu0 0.0
        %556 = vmatmul.mubr.f32.gmra.mrb[0].mxu0 %v486
        %v557 = vpop.f32.mrb[0].mxu0
        %v558 = vadd.f32 0.0, %v557
        %v559 = vpop.f32.mrb[0].mxu0
        %560 = vdwg.mxu0
        %v561 = vmul.f32 %v558, 0.17677669
        %vm562 = vcmask 64512
        %v563 = vsel %vm562, %v561, -inf
        %564 = vmax.xlane.f32.xlu0 %v563
        %v565 = vpop.xlane.xlu0 %564
        %v566 = vsub.f32 %v561, %v565
        %v567 = vmul.f32 %v566, 1.442695
        %v568 = vpow.pop %v567
        %v569 = vsel %vm562, %v568, 0.0
        %570 = vadd.xlane.f32.xlu0 %v569
        %v571 = vpop.xlane.xlu0 %570
        %v572 = vrcp.pop %v571
        %v573 = vmul.f32 %v568, %v572
        %574 = vrot.lane.b32.xlu0 %v481, 64
        %v575 = vpop.permute.xlu0 %574
        %v578 = vsel %vm562, %v573, 0
        %580 = vmatprep.subr.mxu0 0.0
        %581 = vmatpush1.msra.mxu0 %v575
        %582 = vmatprep.subr.mxu0 0.0
        %583 = vmatpush1.msra.mxu0 0.0
        %584 = vmatprep.subr.mxu0 0.0
        %585 = vmatpush1.msra.mxu0 0.0
        %586 = vmatprep.subr.mxu0 0.0
        %587 = vmatpush1.msra.mxu0 0.0
        %588 = vmatprep.subr.mxu0 0.0
        %589 = vmatpush1.msra.mxu0 0.0
        %590 = vmatprep.subr.mxu0 0.0
        %591 = vmatpush1.msra.mxu0 0.0
        %592 = vmatprep.subr.mxu0 0.0
        %593 = vmatpush1.msra.mxu0 0.0
        %594 = vmatprep.subr.mxu0 0.0
        %595 = vmatpush1.msra.mxu0 0.0
        %596 = vmatprep.subr.mxu0 0.0
        %597 = vmatpush1.msra.mxu0 0.0
        %598 = vmatprep.subr.mxu0 0.0
        %599 = vmatpush1.msra.mxu0 0.0
        %600 = vmatprep.subr.mxu0 0.0
        %601 = vmatpush1.msra.mxu0 0.0
        %602 = vmatprep.subr.mxu0 0.0
        %603 = vmatpush1.msra.mxu0 0.0
        %604 = vmatprep.subr.mxu0 0.0
        %605 = vmatpush1.msra.mxu0 0.0
        %606 = vmatprep.subr.mxu0 0.0
        %607 = vmatpush1.msra.mxu0 0.0
        %608 = vmatprep.subr.mxu0 0.0
        %609 = vmatpush1.msra.mxu0 0.0
        %610 = vmatprep.subr.mxu0 0.0
        %611 = vmatpush1.msra.mxu0 0.0
        %612 = vmatprep.subr.mxu0 0.0
        %613 = vmatpush1.msra.mxu0 0.0
        %614 = vmatprep.subr.mxu0 0.0
        %615 = vmatpush1.msra.mxu0 0.0
        %616 = vmatprep.subr.mxu0 0.0
        %617 = vmatpush1.msra.mxu0 0.0
        %618 = vmatprep.subr.mxu0 0.0
        %619 = vmatpush1.msra.mxu0 0.0
        %620 = vmatprep.subr.mxu0 0.0
        %621 = vmatpush1.msra.mxu0 0.0
        %622 = vmatprep.subr.mxu0 0.0
        %623 = vmatpush1.msra.mxu0 0.0
        %624 = vmatprep.subr.mxu0 0.0
        %625 = vmatpush1.msra.mxu0 0.0
        %626 = vmatprep.subr.mxu0 0.0
        %627 = vmatpush1.msra.mxu0 0.0
        %628 = vmatprep.subr.mxu0 0.0
        %629 = vmatpush1.msra.mxu0 0.0
        %630 = vmatprep.subr.mxu0 0.0
        %631 = vmatpush1.msra.mxu0 0.0
        %632 = vmatprep.subr.mxu0 0.0
        %633 = vmatpush1.msra.mxu0 0.0
        %634 = vmatprep.subr.mxu0 0.0
        %635 = vmatpush1.msra.mxu0 0.0
        %636 = vmatprep.subr.mxu0 0.0
        %637 = vmatpush1.msra.mxu0 0.0
        %638 = vmatprep.subr.mxu0 0.0
        %639 = vmatpush1.msra.mxu0 0.0
        %640 = vmatprep.subr.mxu0 0.0
        %641 = vmatpush1.msra.mxu0 0.0
        %642 = vmatprep.subr.mxu0 0.0
        %643 = vmatpush1.msra.mxu0 0.0
        %644 = vmatprep.mubr.f32.mxu0 0.0
        %645 = vmatmul.mubr.f32.gmra.mrb[0].mxu0 %v578
        %v646 = vpop.f32.mrb[0].mxu0
        %v647 = vadd.f32 0.0, %v646
        %v648 = vpop.f32.mrb[0].mxu0
        %649 = vdwg.mxu0
        %650 = vrot.lane.b32.xlu0 %v408, 96
        %v651 = vpop.permute.xlu0 %650
        %652 = vrot.lane.b32.xlu0 %v481, 96
        %v653 = vpop.permute.xlu0 %652
        %v654 = vsel %vm484, %v651, 0
        %v656 = vsel %vm484, %v653, 0
        %658 = vmatprep.subr.mxu0 0.0
        %659 = vmatpush1.xpose.msra.mxu0 %v656
        %660 = vmatprep.subr.mxu0 0.0
        %661 = vmatpush1.xpose.msra.mxu0 0.0
        %662 = vmatprep.subr.mxu0 0.0
        %663 = vmatpush1.xpose.msra.mxu0 0.0
        %664 = vmatprep.subr.mxu0 0.0
        %665 = vmatpush1.xpose.msra.mxu0 0.0
        %666 = vmatprep.subr.mxu0 0.0
        %667 = vmatpush1.xpose.msra.mxu0 0.0
        %668 = vmatprep.subr.mxu0 0.0
        %669 = vmatpush1.xpose.msra.mxu0 0.0
        %670 = vmatprep.subr.mxu0 0.0
        %671 = vmatpush1.xpose.msra.mxu0 0.0
        %672 = vmatprep.subr.mxu0 0.0
        %673 = vmatpush1.xpose.msra.mxu0 0.0
        %674 = vmatprep.subr.mxu0 0.0
        %675 = vmatpush1.xpose.msra.mxu0 0.0
        %676 = vmatprep.subr.mxu0 0.0
        %677 = vmatpush1.xpose.msra.mxu0 0.0
        %678 = vmatprep.subr.mxu0 0.0
        %679 = vmatpush1.xpose.msra.mxu0 0.0
        %680 = vmatprep.subr.mxu0 0.0
        %681 = vmatpush1.xpose.msra.mxu0 0.0
        %682 = vmatprep.subr.mxu0 0.0
        %683 = vmatpush1.xpose.msra.mxu0 0.0
        %684 = vmatprep.subr.mxu0 0.0
        %685 = vmatpush1.xpose.msra.mxu0 0.0
        %686 = vmatprep.subr.mxu0 0.0
        %687 = vmatpush1.xpose.msra.mxu0 0.0
        %688 = vmatprep.subr.mxu0 0.0
        %689 = vmatpush1.xpose.msra.mxu0 0.0
        %690 = vmatprep.subr.mxu0 0.0
        %691 = vmatpush1.xpose.msra.mxu0 0.0
        %692 = vmatprep.subr.mxu0 0.0
        %693 = vmatpush1.xpose.msra.mxu0 0.0
        %694 = vmatprep.subr.mxu0 0.0
        %695 = vmatpush1.xpose.msra.mxu0 0.0
        %696 = vmatprep.subr.mxu0 0.0
        %697 = vmatpush1.xpose.msra.mxu0 0.0
        %698 = vmatprep.subr.mxu0 0.0
        %699 = vmatpush1.xpose.msra.mxu0 0.0
        %700 = vmatprep.subr.mxu0 0.0
        %701 = vmatpush1.xpose.msra.mxu0 0.0
        %702 = vmatprep.subr.mxu0 0.0
        %703 = vmatpush1.xpose.msra.mxu0 0.0
        %704 = vmatprep.subr.mxu0 0.0
        %705 = vmatpush1.xpose.msra.mxu0 0.0
        %706 = vmatprep.subr.mxu0 0.0
        %707 = vmatpush1.xpose.msra.mxu0 0.0
        %708 = vmatprep.subr.mxu0 0.0
        %709 = vmatpush1.xpose.msra.mxu0 0.0
        %710 = vmatprep.subr.mxu0 0.0
        %711 = vmatpush1.xpose.msra.mxu0 0.0
        %712 = vmatprep.subr.mxu0 0.0
        %713 = vmatpush1.xpose.msra.mxu0 0.0
        %714 = vmatprep.subr.mxu0 0.0
        %715 = vmatpush1.xpose.msra.mxu0 0.0
        %716 = vmatprep.subr.mxu0 0.0
        %717 = vmatpush1.xpose.msra.mxu0 0.0
        %718 = vmatprep.subr.mxu0 0.0
        %719 = vmatpush1.xpose.msra.mxu0 0.0
        %720 = vmatprep.subr.mxu0 0.0
        %721 = vmatpush1.xpose.msra.mxu0 0.0
        %722 = vmatprep.mubr.f32.mxu0 0.0
        %723 = vmatmul.mubr.f32.gmra.mrb[0].mxu0 %v654
        %v724 = vpop.f32.mrb[0].mxu0
        %v725 = vadd.f32 0.0, %v724
        %v726 = vpop.f32.mrb[0].mxu0
        %727 = vdwg.mxu0
        %v728 = vmul.f32 %v725, 0.17677669
        %v729 = vsel %vm562, %v728, -inf
        %730 = vmax.xlane.f32.xlu0 %v729
        %v731 = vpop.xlane.xlu0 %730
        %v732 = vsub.f32 %v728, %v731
        %v733 = vmul.f32 %v732, 1.442695
        %v734 = vpow.pop %v733
        %v735 = vsel %vm562, %v734, 0.0
        %736 = vadd.xlane.f32.xlu0 %v735
        %v737 = vpop.xlane.xlu0 %736
        %v738 = vrcp.pop %v737
        %v739 = vmul.f32 %v734, %v738
        %740 = vrot.lane.b32.xlu0 %v481, 32
        %v741 = vpop.permute.xlu0 %740
        %v744 = vsel %vm562, %v739, 0
        %746 = vmatprep.subr.mxu0 0.0
        %747 = vmatpush1.msra.mxu0 %v741
        %748 = vmatprep.subr.mxu0 0.0
        %749 = vmatpush1.msra.mxu0 0.0
        %750 = vmatprep.subr.mxu0 0.0
        %751 = vmatpush1.msra.mxu0 0.0
        %752 = vmatprep.subr.mxu0 0.0
        %753 = vmatpush1.msra.mxu0 0.0
        %754 = vmatprep.subr.mxu0 0.0
        %755 = vmatpush1.msra.mxu0 0.0
        %756 = vmatprep.subr.mxu0 0.0
        %757 = vmatpush1.msra.mxu0 0.0
        %758 = vmatprep.subr.mxu0 0.0
        %759 = vmatpush1.msra.mxu0 0.0
        %760 = vmatprep.subr.mxu0 0.0
        %761 = vmatpush1.msra.mxu0 0.0
        %762 = vmatprep.subr.mxu0 0.0
        %763 = vmatpush1.msra.mxu0 0.0
        %764 = vmatprep.subr.mxu0 0.0
        %765 = vmatpush1.msra.mxu0 0.0
        %766 = vmatprep.subr.mxu0 0.0
        %767 = vmatpush1.msra.mxu0 0.0
        %768 = vmatprep.subr.mxu0 0.0
        %769 = vmatpush1.msra.mxu0 0.0
        %770 = vmatprep.subr.mxu0 0.0
        %771 = vmatpush1.msra.mxu0 0.0
        %772 = vmatprep.subr.mxu0 0.0
        %773 = vmatpush1.msra.mxu0 0.0
        %774 = vmatprep.subr.mxu0 0.0
        %775 = vmatpush1.msra.mxu0 0.0
        %776 = vmatprep.subr.mxu0 0.0
        %777 = vmatpush1.msra.mxu0 0.0
        %778 = vmatprep.subr.mxu0 0.0
        %779 = vmatpush1.msra.mxu0 0.0
        %780 = vmatprep.subr.mxu0 0.0
        %781 = vmatpush1.msra.mxu0 0.0
        %782 = vmatprep.subr.mxu0 0.0
        %783 = vmatpush1.msra.mxu0 0.0
        %784 = vmatprep.subr.mxu0 0.0
        %785 = vmatpush1.msra.mxu0 0.0
        %786 = vmatprep.subr.mxu0 0.0
        %787 = vmatpush1.msra.mxu0 0.0
        %788 = vmatprep.subr.mxu0 0.0
        %789 = vmatpush1.msra.mxu0 0.0
        %790 = vmatprep.subr.mxu0 0.0
        %791 = vmatpush1.msra.mxu0 0.0
        %792 = vmatprep.subr.mxu0 0.0
        %793 = vmatpush1.msra.mxu0 0.0
        %794 = vmatprep.subr.mxu0 0.0
        %795 = vmatpush1.msra.mxu0 0.0
        %796 = vmatprep.subr.mxu0 0.0
        %797 = vmatpush1.msra.mxu0 0.0
        %798 = vmatprep.subr.mxu0 0.0
        %799 = vmatpush1.msra.mxu0 0.0
        %800 = vmatprep.subr.mxu0 0.0
        %801 = vmatpush1.msra.mxu0 0.0
        %802 = vmatprep.subr.mxu0 0.0
        %803 = vmatpush1.msra.mxu0 0.0
        %804 = vmatprep.subr.mxu0 0.0
        %805 = vmatpush1.msra.mxu0 0.0
        %806 = vmatprep.subr.mxu0 0.0
        %807 = vmatpush1.msra.mxu0 0.0
        %808 = vmatprep.subr.mxu0 0.0
        %809 = vmatpush1.msra.mxu0 0.0
        %810 = vmatprep.mubr.f32.mxu0 0.0
        %811 = vmatmul.mubr.f32.gmra.mrb[0].mxu0 %v744
        %v812 = vpop.f32.mrb[0].mxu0
        %v813 = vadd.f32 0.0, %v812
        %v814 = vpop.f32.mrb[0].mxu0
        %815 = vdwg.mxu0
        %817 = vrot.lane.b32.xlu0 %v813, 32
        %v818 = vpop.permute.xlu0 %817
        %v820 = vsel %vm484, %v647, %v818
        %v822 = vsel %vm562, %v323, 0
        %v825 = vsel %vm562, %v324, 0
        %827 = vmatprep.subr.mxu0 0.0
        %828 = vmatpush1.msra.mxu0 %v820
        %829 = vmatprep.subr.mxu0 0.0
        %830 = vmatpush1.msra.mxu0 0.0
        %831 = vmatprep.subr.mxu0 0.0
        %832 = vmatpush1.msra.mxu0 0.0
        %833 = vmatprep.subr.mxu0 0.0
        %834 = vmatpush1.msra.mxu0 0.0
        %835 = vmatprep.subr.mxu0 0.0
        %836 = vmatpush1.msra.mxu0 0.0
        %837 = vmatprep.subr.mxu0 0.0
        %838 = vmatpush1.msra.mxu0 0.0
        %839 = vmatprep.subr.mxu0 0.0
        %840 = vmatpush1.msra.mxu0 0.0
        %841 = vmatprep.subr.mxu0 0.0
        %842 = vmatpush1.msra.mxu0 0.0
        %843 = vmatprep.subr.mxu0 0.0
        %844 = vmatpush1.msra.mxu0 0.0
        %845 = vmatprep.subr.mxu0 0.0
        %846 = vmatpush1.msra.mxu0 0.0
        %847 = vmatprep.subr.mxu0 0.0
        %848 = vmatpush1.msra.mxu0 0.0
        %849 = vmatprep.subr.mxu0 0.0
        %850 = vmatpush1.msra.mxu0 0.0
        %851 = vmatprep.subr.mxu0 0.0
        %852 = vmatpush1.msra.mxu0 0.0
        %853 = vmatprep.subr.mxu0 0.0
        %854 = vmatpush1.msra.mxu0 0.0
        %855 = vmatprep.subr.mxu0 0.0
        %856 = vmatpush1.msra.mxu0 0.0
        %857 = vmatprep.subr.mxu0 0.0
        %858 = vmatpush1.msra.mxu0 0.0
        %859 = vmatprep.subr.mxu0 0.0
        %860 = vmatpush1.msra.mxu0 0.0
        %861 = vmatprep.subr.mxu0 0.0
        %862 = vmatpush1.msra.mxu0 0.0
        %863 = vmatprep.subr.mxu0 0.0
        %864 = vmatpush1.msra.mxu0 0.0
        %865 = vmatprep.subr.mxu0 0.0
        %866 = vmatpush1.msra.mxu0 0.0
        %867 = vmatprep.subr.mxu0 0.0
        %868 = vmatpush1.msra.mxu0 0.0
        %869 = vmatprep.subr.mxu0 0.0
        %870 = vmatpush1.msra.mxu0 0.0
        %871 = vmatprep.subr.mxu0 0.0
        %872 = vmatpush1.msra.mxu0 0.0
        %873 = vmatprep.subr.mxu0 0.0
        %874 = vmatpush1.msra.mxu0 0.0
        %875 = vmatprep.subr.mxu0 0.0
        %876 = vmatpush1.msra.mxu0 0.0
        %877 = vmatprep.subr.mxu0 0.0
        %878 = vmatpush1.msra.mxu0 0.0
        %879 = vmatprep.subr.mxu0 0.0
        %880 = vmatpush1.msra.mxu0 0.0
        %881 = vmatprep.subr.mxu0 0.0
        %882 = vmatpush1.msra.mxu0 0.0
        %883 = vmatprep.subr.mxu0 0.0
        %884 = vmatpush1.msra.mxu0 0.0
        %885 = vmatprep.subr.mxu0 0.0
        %886 = vmatpush1.msra.mxu0 0.0
        %887 = vmatprep.subr.mxu0 0.0
        %888 = vmatpush1.msra.mxu0 0.0
        %889 = vmatprep.subr.mxu0 0.0
        %890 = vmatpush1.msra.mxu0 0.0
        %891 = vmatprep.mubr.f32.mxu0 0.0
        %892 = vmatmul.mubr.f32.gmra.mrb[0].mxu0 %v822
        %v893 = vpop.f32.mrb[0].mxu0
        %v894 = vadd.f32 0.0, %v893
        %v895 = vpop.f32.mrb[0].mxu0
        %896 = vmatprep.mubr.f32.mxu0 0.0
        %897 = vmatmul.mubr.f32.gmra.mrb[0].mxu0 %v825
        %v898 = vpop.f32.mrb[0].mxu0
        %v899 = vadd.f32 0.0, %v898
        %v900 = vpop.f32.mrb[0].mxu0
        %901 = vdwg.mxu0
        %vm902 = vcmask 523264
        %903 = vst.msk [vmem:[%s309] sm:$0xff] %vm902, %v894
        %904 = vst.msk [vmem:[%s309 + $0x8] sm:$0xff] %vm902, %v899
        %s905 = sand.u32 %s169, 1
        %s906 = scalar_lea.sflag [#allocation4], %s905
        %s907 = sand.u32 %s169, 1
        %s908 = smul.addr %s907, 16
        %s909 = scalar_lea.vmem [#allocation7], %s908
        // Predicated region
        $region49: #{tpu_custom_call.1} parent=39 // pred_check
          %p910 = pneg %p179
        $region50: #{tpu_custom_call.1} parent=39 // pred_check_branch
          %912 = sbr.rel (%p910) target = $region52
        $region51: #{tpu_custom_call.1} parent=39 // pred_region
          %s914 = ssub.s32 256, 256
          %915 = vsyncadd %s906, %s914
          %s916 = smul.addr %s28, 2
          %s917 = smul.addr %s27, 2
          %s918 = sadd.s32 %s916, %s917
          %s919 = smul.addr %s918, 128
          %s920 = scalar_lea.hbm %s5, %s919
          %s921 = sshll.u32 %s909, 4
          %s922 = int_to_ptr.vmem [resolvable:$true] %s921
          %927 = dma.vmem_to_hbm [thread:$0]  %s922, 256, %s920, %s906, 128, 128, 8
        $region52: #{tpu_custom_call.1} parent=39 // pred_fallthru
          _
      $region40: #{tpu_custom_call.1} parent=5 // pred_fallthru
        _
      %p928 = scmp.le.s32.totalorder 2, %s18
      // Predicated region
      $region53: #{tpu_custom_call.1} parent=5 // pred_check
        %p929 = pneg %p928
      $region54: #{tpu_custom_call.1} parent=5 // pred_check_branch
        %931 = sbr.rel (%p929) target = $region56
      $region55: #{tpu_custom_call.1} parent=5 // pred_region
        %s932 = ssub.s32 %s18, 2
        // Predicated region
        $region57: #{tpu_custom_call.1} parent=55 // pred_check
          %p933 = pneg %p185
        $region58: #{tpu_custom_call.1} parent=55 // pred_check_branch
          %935 = sbr.rel (%p933) target = $region60
        $region59: #{tpu_custom_call.1} parent=55 // pred_region
          %s936 = sand.u32 %s170, 1
          %s937 = scalar_lea.sflag [#allocation4], %s936
          %s938 = sand.u32 %s170, 1
          %s939 = smul.addr %s938, 16
          %s940 = scalar_lea.vmem [#allocation7], %s939
          %941 = dma.done %s937, 256
        $region60: #{tpu_custom_call.1} parent=55 // pred_fallthru
          _
      $region56: #{tpu_custom_call.1} parent=5 // pred_fallthru
        _
    $region6: #{tpu_custom_call.1} parent=1 // loop_footer
      %s22 = sadd.s32 1, %s18
    $region7: #{tpu_custom_call.1} parent=1 // loop_footer_branch
      %17 = sbr.rel target = $region3
    $region8: #{tpu_custom_call.1} parent=1 // loop_exit
      _
    %942 = vsyncpa [#allocation3], 1
    %s943 = scalar_lea.sflag [#allocation3], 1
    %944 = vsyncpa %s943, 1
    %945 = vsyncpa [#allocation6], 1
    %s946 = scalar_lea.sflag [#allocation6], 1
    %947 = vsyncpa %s946, 1
    %948 = vsyncpa [#allocation4], 1
    %s949 = scalar_lea.sflag [#allocation4], 1
    %950 = vsyncpa %s949, 1

</llo_original>
